<compile_context>
chip_gen: v7x
topology: tpu7x:2x2x1
jax: 0.10.0
libtpu: 0.0.40
codegen_flags: <defaults>
</compile_context>

<pallas_src>
import functools

import jax
import jax.numpy as jnp
from jax.experimental import pallas as pl
from jax.experimental.pallas import tpu as pltpu

_LANE = 128
_SUBLANE = 8


def _lstm_env_kernel(x_ref, w_ih_ref, w_hh_ref, b_ref, w_head_ref, b_head_ref,
                     out_ref, *, T, Bp, H):
    """Single-call LSTM recurrence + fused output heads (all operands in VMEM).

    Shapes:
      x_ref      : (T*Bp, Dpad) f32   time-major, batch padded to 8, D padded to 128
      w_ih_ref   : (Dpad, 4H)   bf16  gate columns ordered [i | f | o | g]
      w_hh_ref   : (H,    4H)   bf16  gate columns ordered [i | f | o | g]
      b_ref      : (1,    4H)   f32   fused b_ih + b_hh (same column order)
      w_head_ref : (H,    Np)   bf16  [reward | next_state | zero pad], Np = 128
      b_head_ref : (1,    Np)   f32
      out_ref    : (Bp,   Np)   f32   lane-dense fused head output
    """
    # --- Hoisted input projection: ONE MXU call covers every timestep and the
    # bias broadcast happens exactly once (not once per recurrence step).
    x = x_ref[...].astype(jnp.bfloat16)                               # (T*Bp, Dpad)
    xg = (jnp.dot(x, w_ih_ref[...], preferred_element_type=jnp.float32)
          + b_ref[...])                                               # (T*Bp, 4H) f32

    w_hh = w_hh_ref[...]                                              # (H, 4H) bf16

    h = jnp.zeros((Bp, H), jnp.float32)
    c = jnp.zeros((Bp, H), jnp.float32)

    # T is small & static -> full unroll (fine for T <= ~16).
    # TODO(synk): for larger T switch to lax.fori_loop(..., unroll=4) over a
    # VMEM scratch holding xg to bound vreg live ranges / compile time.
    for t in range(T):
        # Only the hidden-state matmul remains on the serial critical path.
        gates = xg[t * Bp:(t + 1) * Bp, :] + jnp.dot(
            h.astype(jnp.bfloat16), w_hh, preferred_element_type=jnp.float32)
        # Gate columns are [i, f, o, g]: one sigmoid EUP push over the first 3H
        # lanes and one tanh push over the last H lanes per step.
        sig = jax.nn.sigmoid(gates[:, :3 * H])
        g_g = jnp.tanh(gates[:, 3 * H:])
        i_g = sig[:, 0 * H:1 * H]
        f_g = sig[:, 1 * H:2 * H]
        o_g = sig[:, 2 * H:3 * H]
        c = f_g * c + i_g * g_g
        h = o_g * jnp.tanh(c)

    # --- Fused heads: one MXU call, one unmasked lane-dense (Bp, 128) store.
    out = (jnp.dot(h.astype(jnp.bfloat16), w_head_ref[...],
                   preferred_element_type=jnp.float32)
           + b_head_ref[...])
    out_ref[...] = out.astype(out_ref.dtype)


def multi_task_lstm_env_model(state_seq, action_seq, params):
    """state_seq (B,T,S), action_seq (B,T,A) -> (reward (B,1), next_state (B,S))."""
    x = jnp.concatenate([state_seq, action_seq], axis=-1)             # (B, T, D)
    B, T, D = x.shape
    H = params["w_hh_t"].shape[0]
    S = params["state_dim"]
    Dpad = params["w_ih_t"].shape[0]
    Np = params["w_head"].shape[1]
    Bp = max(_SUBLANE, -(-B // _SUBLANE) * _SUBLANE)

    # Layout plumbing (outside the serial recurrence): pad feature dim to 128
    # lanes and batch to 8 sublanes, go time-major and flatten so the per-step
    # gate slice inside the kernel is a contiguous, sublane-aligned row block.
    xp = jnp.zeros((T, Bp, Dpad), jnp.float32)
    xp = xp.at[:, :B, :D].set(jnp.transpose(x, (1, 0, 2)).astype(jnp.float32))
    x2d = xp.reshape(T * Bp, Dpad)

    kernel = functools.partial(_lstm_env_kernel, T=T, Bp=Bp, H=H)
    vmem = pl.BlockSpec(memory_space=pltpu.MemorySpace.VMEM)
    out = pl.pallas_call(
        kernel,
        out_shape=jax.ShapeDtypeStruct((Bp, Np), jnp.float32),
        in_specs=[vmem] * 6,
        out_specs=vmem,
        # Everything (< 0.5 MiB) fits VMEM on every generation; no grid needed
        # at these sizes.
        # TODO(synk): for large B add a batch grid (block (T, TB, Dpad), TB a
        # multiple of 8) with dimension_semantics=("parallel",) so v7x's second
        # TensorCore is used and per-TC VMEM stays within its 64 MiB.
    )(x2d, params["w_ih_t"], params["w_hh_t"], params["b"],
      params["w_head"], params["b_head"])

    reward = out[:B, 0:1]
    next_state = out[:B, 1:1 + S]
    return reward, next_state


def init_raw_params(key, state_dim, action_dim, hidden_dim):
    """PyTorch-default-like uniform init, kept in the PyTorch layouts."""
    D = state_dim + action_dim
    H = hidden_dim
    ks = jax.random.split(key, 8)
    k_lstm = 1.0 / jnp.sqrt(H)
    k_fc = 1.0 / jnp.sqrt(H)
    return {
        "w_ih": jax.random.uniform(ks[0], (4 * H, D), jnp.float32, -k_lstm, k_lstm),
        "w_hh": jax.random.uniform(ks[1], (4 * H, H), jnp.float32, -k_lstm, k_lstm),
        "b_ih": jax.random.uniform(ks[2], (4 * H,), jnp.float32, -k_lstm, k_lstm),
        "b_hh": jax.random.uniform(ks[3], (4 * H,), jnp.float32, -k_lstm, k_lstm),
        "w_r": jax.random.uniform(ks[4], (1, H), jnp.float32, -k_fc, k_fc),
        "b_r": jax.random.uniform(ks[5], (1,), jnp.float32, -k_fc, k_fc),
        "w_s": jax.random.uniform(ks[6], (state_dim, H), jnp.float32, -k_fc, k_fc),
        "b_s": jax.random.uniform(ks[7], (state_dim,), jnp.float32, -k_fc, k_fc),
    }


def prepare_kernel_params(raw):
    """Permute/pad/transpose the PyTorch-layout weights into the kernel layout."""
    w_ih = raw["w_ih"]          # (4H, D) rows in PyTorch gate order [i; f; g; o]
    w_hh = raw["w_hh"]          # (4H, H)
    H = w_hh.shape[1]
    D = w_ih.shape[1]
    S = raw["w_s"].shape[0]
    Dpad = -(-D // _LANE) * _LANE
    Np = -(-(1 + S) // _LANE) * _LANE

    # Reorder gate blocks [i, f, g, o] -> [i, f, o, g] so the kernel applies one
    # sigmoid over the first 3H columns and one tanh over the last H.
    perm = jnp.concatenate([
        jnp.arange(0, H), jnp.arange(H, 2 * H),
        jnp.arange(3 * H, 4 * H), jnp.arange(2 * H, 3 * H)])

    w_ih_t = jnp.zeros((Dpad, 4 * H), jnp.float32).at[:D, :].set(w_ih[perm].T)
    w_hh_t = w_hh[perm].T
    b = (raw["b_ih"] + raw["b_hh"])[perm].reshape(1, 4 * H)

    # Fused heads: [reward | next_state] padded to a lane-dense width of 128.
    w_head = jnp.zeros((H, Np), jnp.float32)
    w_head = w_head.at[:, 0:1].set(raw["w_r"].T)
    w_head = w_head.at[:, 1:1 + S].set(raw["w_s"].T)
    b_head = jnp.zeros((1, Np), jnp.float32)
    b_head = b_head.at[0, 0].set(raw["b_r"][0])
    b_head = b_head.at[0, 1:1 + S].set(raw["b_s"])

    return {
        "w_ih_t": w_ih_t.astype(jnp.bfloat16),   # (Dpad, 4H) bf16 (MXU-native)
        "w_hh_t": w_hh_t.astype(jnp.bfloat16),   # (H, 4H)    bf16
        "b": b,                                  # (1, 4H)    f32
        "w_head": w_head.astype(jnp.bfloat16),   # (H, Np)    bf16
        "b_head": b_head,                        # (1, Np)    f32
        "state_dim": S,
    }


def reference_forward(state_seq, action_seq, raw, matmul_dtype=jnp.float32):
    """Pure-JAX replica of the PyTorch forward. matmul_dtype=bfloat16 mirrors
    the kernel's MXU input precision (with f32 accumulation) for a tight check;
    float32 gives the exact PyTorch-semantics reference."""
    x = jnp.concatenate([state_seq, action_seq], axis=-1)
    B, T, _ = x.shape
    H = raw["w_hh"].shape[1]
    w_ih_t = raw["w_ih"].T.astype(matmul_dtype)
    w_hh_t = raw["w_hh"].T.astype(matmul_dtype)
    b = (raw["b_ih"] + raw["b_hh"])[None, :]
    h = jnp.zeros((B, H), jnp.float32)
    c = jnp.zeros((B, H), jnp.float32)
    for t in range(T):
        g = (jnp.dot(x[:, t, :].astype(matmul_dtype), w_ih_t,
                     preferred_element_type=jnp.float32)
             + jnp.dot(h.astype(matmul_dtype), w_hh_t,
                       preferred_element_type=jnp.float32)
             + b)
        i_g = jax.nn.sigmoid(g[:, 0 * H:1 * H])
        f_g = jax.nn.sigmoid(g[:, 1 * H:2 * H])
        g_g = jnp.tanh(g[:, 2 * H:3 * H])
        o_g = jax.nn.sigmoid(g[:, 3 * H:4 * H])
        c = f_g * c + i_g * g_g
        h = o_g * jnp.tanh(c)
    hm = h.astype(matmul_dtype)
    reward = jnp.dot(hm, raw["w_r"].T.astype(matmul_dtype),
                     preferred_element_type=jnp.float32) + raw["b_r"][None, :]
    next_state = jnp.dot(hm, raw["w_s"].T.astype(matmul_dtype),
                         preferred_element_type=jnp.float32) + raw["b_s"][None, :]
    return reward, next_state


if __name__ == "__main__":
    state_dim = 45
    action_dim = 45
    hidden_dim = 128
    batch = 2
    seq_len = 5

    key = jax.random.PRNGKey(0)
    k_state, k_action, k_params = jax.random.split(key, 3)

    state_seq = jax.random.normal(k_state, (batch, seq_len, state_dim), jnp.float32)
    action_seq = jax.random.normal(k_action, (batch, seq_len, action_dim), jnp.float32)

    raw = init_raw_params(k_params, state_dim, action_dim, hidden_dim)
    params = prepare_kernel_params(raw)

    reward, next_state = multi_task_lstm_env_model(state_seq, action_seq, params)
    jax.block_until_ready((reward, next_state))

    assert reward.shape == (batch, 1)
    assert next_state.shape == (batch, state_dim)

    # Tight check: reference using the same bf16-matmul / f32-accumulate math.
    ref_r_bf, ref_s_bf = reference_forward(state_seq, action_seq, raw, jnp.bfloat16)
    assert jnp.allclose(reward, ref_r_bf, atol=1e-4, rtol=1e-4)
    assert jnp.allclose(next_state, ref_s_bf, atol=1e-4, rtol=1e-4)

    # Loose check: full-f32 (PyTorch-semantics) reference; slack covers the
    # bf16 MXU-input quantization.
    ref_r_f32, ref_s_f32 = reference_forward(state_seq, action_seq, raw, jnp.float32)
    assert jnp.allclose(reward, ref_r_f32, atol=5e-2, rtol=5e-2)
    assert jnp.allclose(next_state, ref_s_f32, atol=5e-2, rtol=5e-2)

    print("KERNEL_OK")
</pallas_src>

<mosaic_0001>
module attributes {stable_mosaic.version = 11 : i64} {
  func.func @_lstm_env_kernel(%arg0: memref<40x128xf32, #tpu.memory_space<vmem>>, %arg1: memref<128x512xbf16, #tpu.memory_space<vmem>>, %arg2: memref<128x512xbf16, #tpu.memory_space<vmem>>, %arg3: memref<1x512xf32, #tpu.memory_space<vmem>>, %arg4: memref<128x128xbf16, #tpu.memory_space<vmem>>, %arg5: memref<1x128xf32, #tpu.memory_space<vmem>>, %arg6: memref<8x128xf32, #tpu.memory_space<vmem>>) attributes {dimension_semantics = [], scalar_prefetch = 0 : i64, scratch_operands = 0 : i64, tpu.core_type = #tpu.core_type<tc>} {
    %c0 = arith.constant 0 : index
    %c0_0 = arith.constant 0 : index
    %0 = vector.load %arg0[%c0, %c0_0] : memref<40x128xf32, #tpu.memory_space<vmem>>, vector<40x128xf32>
    %1 = arith.truncf %0 : vector<40x128xf32> to vector<40x128xbf16>
    %c0_1 = arith.constant 0 : index
    %c0_2 = arith.constant 0 : index
    %2 = vector.load %arg1[%c0_1, %c0_2] : memref<128x512xbf16, #tpu.memory_space<vmem>>, vector<128x512xbf16>
    %cst = arith.constant dense<0.000000e+00> : vector<40x512xf32>
    %3 = tpu.matmul %1, %2, %cst {dimension_numbers = #tpu.dot_dimension_numbers<[1], [0], [0], [1], [0, 0, 1, 1], [], []>} : vector<40x128xbf16>, vector<128x512xbf16>, vector<40x512xf32> -> vector<40x512xf32>
    %c0_3 = arith.constant 0 : index
    %c0_4 = arith.constant 0 : index
    %4 = vector.load %arg3[%c0_3, %c0_4] : memref<1x512xf32, #tpu.memory_space<vmem>>, vector<1x512xf32>
    %5 = vector.broadcast %4 : vector<1x512xf32> to vector<40x512xf32>
    %6 = arith.addf %3, %5 : vector<40x512xf32>
    %c0_5 = arith.constant 0 : index
    %c0_6 = arith.constant 0 : index
    %7 = vector.load %arg2[%c0_5, %c0_6] : memref<128x512xbf16, #tpu.memory_space<vmem>>, vector<128x512xbf16>
    %cst_7 = arith.constant 0.000000e+00 : f32
    %8 = vector.broadcast %cst_7 : f32 to vector<8x128xf32>
    %cst_8 = arith.constant 0.000000e+00 : f32
    %9 = vector.broadcast %cst_8 : f32 to vector<8x128xf32>
    %10 = vector.extract_strided_slice %6 {offsets = [0, 0], sizes = [8, 512], strides = [1, 1]} : vector<40x512xf32> to vector<8x512xf32>
    %11 = arith.truncf %8 : vector<8x128xf32> to vector<8x128xbf16>
    %cst_9 = arith.constant dense<0.000000e+00> : vector<8x512xf32>
    %12 = tpu.matmul %11, %7, %cst_9 {dimension_numbers = #tpu.dot_dimension_numbers<[1], [0], [0], [1], [0, 0, 1, 1], [], []>} : vector<8x128xbf16>, vector<128x512xbf16>, vector<8x512xf32> -> vector<8x512xf32>
    %13 = arith.addf %10, %12 : vector<8x512xf32>
    %14 = vector.extract_strided_slice %13 {offsets = [0, 0], sizes = [8, 384], strides = [1, 1]} : vector<8x512xf32> to vector<8x384xf32>
    %15 = arith.negf %14 : vector<8x384xf32>
    %16 = math.exp %15 : vector<8x384xf32>
    %cst_10 = arith.constant 1.000000e+00 : f32
    %17 = vector.broadcast %cst_10 : f32 to vector<8x384xf32>
    %18 = arith.addf %17, %16 : vector<8x384xf32>
    %19 = arith.divf %17, %18 : vector<8x384xf32>
    %20 = vector.extract_strided_slice %13 {offsets = [0, 384], sizes = [8, 128], strides = [1, 1]} : vector<8x512xf32> to vector<8x128xf32>
    %21 = math.tanh %20 : vector<8x128xf32>
    %22 = vector.extract_strided_slice %19 {offsets = [0, 0], sizes = [8, 128], strides = [1, 1]} : vector<8x384xf32> to vector<8x128xf32>
    %23 = vector.extract_strided_slice %19 {offsets = [0, 128], sizes = [8, 128], strides = [1, 1]} : vector<8x384xf32> to vector<8x128xf32>
    %24 = vector.extract_strided_slice %19 {offsets = [0, 256], sizes = [8, 128], strides = [1, 1]} : vector<8x384xf32> to vector<8x128xf32>
    %25 = arith.mulf %23, %9 : vector<8x128xf32>
    %26 = arith.mulf %22, %21 : vector<8x128xf32>
    %27 = arith.addf %25, %26 : vector<8x128xf32>
    %28 = math.tanh %27 : vector<8x128xf32>
    %29 = arith.mulf %24, %28 : vector<8x128xf32>
    %30 = vector.extract_strided_slice %6 {offsets = [8, 0], sizes = [8, 512], strides = [1, 1]} : vector<40x512xf32> to vector<8x512xf32>
    %31 = arith.truncf %29 : vector<8x128xf32> to vector<8x128xbf16>
    %cst_11 = arith.constant dense<0.000000e+00> : vector<8x512xf32>
    %32 = tpu.matmul %31, %7, %cst_11 {dimension_numbers = #tpu.dot_dimension_numbers<[1], [0], [0], [1], [0, 0, 1, 1], [], []>} : vector<8x128xbf16>, vector<128x512xbf16>, vector<8x512xf32> -> vector<8x512xf32>
    %33 = arith.addf %30, %32 : vector<8x512xf32>
    %34 = vector.extract_strided_slice %33 {offsets = [0, 0], sizes = [8, 384], strides = [1, 1]} : vector<8x512xf32> to vector<8x384xf32>
    %35 = arith.negf %34 : vector<8x384xf32>
    %36 = math.exp %35 : vector<8x384xf32>
    %cst_12 = arith.constant 1.000000e+00 : f32
    %37 = vector.broadcast %cst_12 : f32 to vector<8x384xf32>
    %38 = arith.addf %37, %36 : vector<8x384xf32>
    %39 = arith.divf %37, %38 : vector<8x384xf32>
    %40 = vector.extract_strided_slice %33 {offsets = [0, 384], sizes = [8, 128], strides = [1, 1]} : vector<8x512xf32> to vector<8x128xf32>
    %41 = math.tanh %40 : vector<8x128xf32>
    %42 = vector.extract_strided_slice %39 {offsets = [0, 0], sizes = [8, 128], strides = [1, 1]} : vector<8x384xf32> to vector<8x128xf32>
    %43 = vector.extract_strided_slice %39 {offsets = [0, 128], sizes = [8, 128], strides = [1, 1]} : vector<8x384xf32> to vector<8x128xf32>
    %44 = vector.extract_strided_slice %39 {offsets = [0, 256], sizes = [8, 128], strides = [1, 1]} : vector<8x384xf32> to vector<8x128xf32>
    %45 = arith.mulf %43, %27 : vector<8x128xf32>
    %46 = arith.mulf %42, %41 : vector<8x128xf32>
    %47 = arith.addf %45, %46 : vector<8x128xf32>
    %48 = math.tanh %47 : vector<8x128xf32>
    %49 = arith.mulf %44, %48 : vector<8x128xf32>
    %50 = vector.extract_strided_slice %6 {offsets = [16, 0], sizes = [8, 512], strides = [1, 1]} : vector<40x512xf32> to vector<8x512xf32>
    %51 = arith.truncf %49 : vector<8x128xf32> to vector<8x128xbf16>
    %cst_13 = arith.constant dense<0.000000e+00> : vector<8x512xf32>
    %52 = tpu.matmul %51, %7, %cst_13 {dimension_numbers = #tpu.dot_dimension_numbers<[1], [0], [0], [1], [0, 0, 1, 1], [], []>} : vector<8x128xbf16>, vector<128x512xbf16>, vector<8x512xf32> -> vector<8x512xf32>
    %53 = arith.addf %50, %52 : vector<8x512xf32>
    %54 = vector.extract_strided_slice %53 {offsets = [0, 0], sizes = [8, 384], strides = [1, 1]} : vector<8x512xf32> to vector<8x384xf32>
    %55 = arith.negf %54 : vector<8x384xf32>
    %56 = math.exp %55 : vector<8x384xf32>
    %cst_14 = arith.constant 1.000000e+00 : f32
    %57 = vector.broadcast %cst_14 : f32 to vector<8x384xf32>
    %58 = arith.addf %57, %56 : vector<8x384xf32>
    %59 = arith.divf %57, %58 : vector<8x384xf32>
    %60 = vector.extract_strided_slice %53 {offsets = [0, 384], sizes = [8, 128], strides = [1, 1]} : vector<8x512xf32> to vector<8x128xf32>
    %61 = math.tanh %60 : vector<8x128xf32>
    %62 = vector.extract_strided_slice %59 {offsets = [0, 0], sizes = [8, 128], strides = [1, 1]} : vector<8x384xf32> to vector<8x128xf32>
    %63 = vector.extract_strided_slice %59 {offsets = [0, 128], sizes = [8, 128], strides = [1, 1]} : vector<8x384xf32> to vector<8x128xf32>
    %64 = vector.extract_strided_slice %59 {offsets = [0, 256], sizes = [8, 128], strides = [1, 1]} : vector<8x384xf32> to vector<8x128xf32>
    %65 = arith.mulf %63, %47 : vector<8x128xf32>
    %66 = arith.mulf %62, %61 : vector<8x128xf32>
    %67 = arith.addf %65, %66 : vector<8x128xf32>
    %68 = math.tanh %67 : vector<8x128xf32>
    %69 = arith.mulf %64, %68 : vector<8x128xf32>
    %70 = vector.extract_strided_slice %6 {offsets = [24, 0], sizes = [8, 512], strides = [1, 1]} : vector<40x512xf32> to vector<8x512xf32>
    %71 = arith.truncf %69 : vector<8x128xf32> to vector<8x128xbf16>
    %cst_15 = arith.constant dense<0.000000e+00> : vector<8x512xf32>
    %72 = tpu.matmul %71, %7, %cst_15 {dimension_numbers = #tpu.dot_dimension_numbers<[1], [0], [0], [1], [0, 0, 1, 1], [], []>} : vector<8x128xbf16>, vector<128x512xbf16>, vector<8x512xf32> -> vector<8x512xf32>
    %73 = arith.addf %70, %72 : vector<8x512xf32>
    %74 = vector.extract_strided_slice %73 {offsets = [0, 0], sizes = [8, 384], strides = [1, 1]} : vector<8x512xf32> to vector<8x384xf32>
    %75 = arith.negf %74 : vector<8x384xf32>
    %76 = math.exp %75 : vector<8x384xf32>
    %cst_16 = arith.constant 1.000000e+00 : f32
    %77 = vector.broadcast %cst_16 : f32 to vector<8x384xf32>
    %78 = arith.addf %77, %76 : vector<8x384xf32>
    %79 = arith.divf %77, %78 : vector<8x384xf32>
    %80 = vector.extract_strided_slice %73 {offsets = [0, 384], sizes = [8, 128], strides = [1, 1]} : vector<8x512xf32> to vector<8x128xf32>
    %81 = math.tanh %80 : vector<8x128xf32>
    %82 = vector.extract_strided_slice %79 {offsets = [0, 0], sizes = [8, 128], strides = [1, 1]} : vector<8x384xf32> to vector<8x128xf32>
    %83 = vector.extract_strided_slice %79 {offsets = [0, 128], sizes = [8, 128], strides = [1, 1]} : vector<8x384xf32> to vector<8x128xf32>
    %84 = vector.extract_strided_slice %79 {offsets = [0, 256], sizes = [8, 128], strides = [1, 1]} : vector<8x384xf32> to vector<8x128xf32>
    %85 = arith.mulf %83, %67 : vector<8x128xf32>
    %86 = arith.mulf %82, %81 : vector<8x128xf32>
    %87 = arith.addf %85, %86 : vector<8x128xf32>
    %88 = math.tanh %87 : vector<8x128xf32>
    %89 = arith.mulf %84, %88 : vector<8x128xf32>
    %90 = vector.extract_strided_slice %6 {offsets = [32, 0], sizes = [8, 512], strides = [1, 1]} : vector<40x512xf32> to vector<8x512xf32>
    %91 = arith.truncf %89 : vector<8x128xf32> to vector<8x128xbf16>
    %cst_17 = arith.constant dense<0.000000e+00> : vector<8x512xf32>
    %92 = tpu.matmul %91, %7, %cst_17 {dimension_numbers = #tpu.dot_dimension_numbers<[1], [0], [0], [1], [0, 0, 1, 1], [], []>} : vector<8x128xbf16>, vector<128x512xbf16>, vector<8x512xf32> -> vector<8x512xf32>
    %93 = arith.addf %90, %92 : vector<8x512xf32>
    %94 = vector.extract_strided_slice %93 {offsets = [0, 0], sizes = [8, 384], strides = [1, 1]} : vector<8x512xf32> to vector<8x384xf32>
    %95 = arith.negf %94 : vector<8x384xf32>
    %96 = math.exp %95 : vector<8x384xf32>
    %cst_18 = arith.constant 1.000000e+00 : f32
    %97 = vector.broadcast %cst_18 : f32 to vector<8x384xf32>
    %98 = arith.addf %97, %96 : vector<8x384xf32>
    %99 = arith.divf %97, %98 : vector<8x384xf32>
    %100 = vector.extract_strided_slice %93 {offsets = [0, 384], sizes = [8, 128], strides = [1, 1]} : vector<8x512xf32> to vector<8x128xf32>
    %101 = math.tanh %100 : vector<8x128xf32>
    %102 = vector.extract_strided_slice %99 {offsets = [0, 0], sizes = [8, 128], strides = [1, 1]} : vector<8x384xf32> to vector<8x128xf32>
    %103 = vector.extract_strided_slice %99 {offsets = [0, 128], sizes = [8, 128], strides = [1, 1]} : vector<8x384xf32> to vector<8x128xf32>
    %104 = vector.extract_strided_slice %99 {offsets = [0, 256], sizes = [8, 128], strides = [1, 1]} : vector<8x384xf32> to vector<8x128xf32>
    %105 = arith.mulf %103, %87 : vector<8x128xf32>
    %106 = arith.mulf %102, %101 : vector<8x128xf32>
    %107 = arith.addf %105, %106 : vector<8x128xf32>
    %108 = math.tanh %107 : vector<8x128xf32>
    %109 = arith.mulf %104, %108 : vector<8x128xf32>
    %110 = arith.truncf %109 : vector<8x128xf32> to vector<8x128xbf16>
    %c0_19 = arith.constant 0 : index
    %c0_20 = arith.constant 0 : index
    %111 = vector.load %arg4[%c0_19, %c0_20] : memref<128x128xbf16, #tpu.memory_space<vmem>>, vector<128x128xbf16>
    %cst_21 = arith.constant dense<0.000000e+00> : vector<8x128xf32>
    %112 = tpu.matmul %110, %111, %cst_21 {dimension_numbers = #tpu.dot_dimension_numbers<[1], [0], [0], [1], [0, 0, 1, 1], [], []>} : vector<8x128xbf16>, vector<128x128xbf16>, vector<8x128xf32> -> vector<8x128xf32>
    %c0_22 = arith.constant 0 : index
    %c0_23 = arith.constant 0 : index
    %113 = vector.load %arg5[%c0_22, %c0_23] : memref<1x128xf32, #tpu.memory_space<vmem>>, vector<1x128xf32>
    %114 = vector.broadcast %113 : vector<1x128xf32> to vector<8x128xf32>
    %115 = arith.addf %112, %114 : vector<8x128xf32>
    %c0_24 = arith.constant 0 : index
    %c0_25 = arith.constant 0 : index
    %116 = vector.load %arg6[%c0_24, %c0_25] : memref<8x128xf32, #tpu.memory_space<vmem>>, vector<8x128xf32>
    tpu.vector_store %arg6[%c0_24, %c0_25], %115 {strides = array<i32>} : memref<8x128xf32, #tpu.memory_space<vmem>>, vector<8x128xf32>,
    return
  }
}

</mosaic_0001>

<llo_original>
// kernel: tpu_custom_call.1
$region0: #{tpu_custom_call.1}
  #allocation0 [shape = 'u32[]', space=smem, size = 0x4, offset = 0x4, fixed_abs, tag = 'smem constant byte address 0x4 - core index']
  #allocation1 [shape = 'u32[144,128]{1,0:T(1,128)}', space=vmem, size = 0x12000, scoped, tag = 'internal scratch']
  %s0 = inlined_call_operand.hbm [shape: f32[40,128], index: 0, kind: input, shape index: {}]
  %s1 = inlined_call_operand.hbm [shape: bf16[128,512], index: 1, kind: input, shape index: {}]
  %s2 = inlined_call_operand.hbm [shape: bf16[128,512], index: 2, kind: input, shape index: {}]
  %s3 = inlined_call_operand.vmem [shape: f32[1,512], index: 3, kind: input, shape index: {}]
  %s4 = inlined_call_operand.hbm [shape: bf16[128,128], index: 4, kind: input, shape index: {}]
  %s5 = inlined_call_operand.vmem [shape: f32[1,128], index: 5, kind: input, shape index: {}]
  %s6 = inlined_call_operand.hbm [shape: f32[8,128], index: 6, kind: output, shape index: {}]
  %s7 = sld [smem:[#allocation0]]
  $region50: #{tpu_custom_call.1} parent=0
    _
  %s9 = ssub.s32 1, %s7
  %s10 = scalar_select 0, %s9, %s7
  $region1: #{tpu_custom_call.1} parent=0
    #allocation2 [shape = 'u8[20480]{0}', space=vmem, size = 0x5000, scoped, tag = 'input window, operand 0, single buffered']
    #allocation3 [shape = 's32[1]{0}', space=sflag, size = 0x4, scoped, tag = 'scoped memory for tpu_custom_call.1']
    #allocation4 [shape = 's32[1]{0}', space=sflag, size = 0x4, scoped, tag = 'scoped memory for tpu_custom_call.1']
    #allocation5 [shape = 'u8[131072]{0}', space=vmem, size = 0x20000, scoped, tag = 'input window, operand 1, single buffered']
    #allocation6 [shape = 's32[1]{0}', space=sflag, size = 0x4, scoped, tag = 'scoped memory for tpu_custom_call.1']
    #allocation7 [shape = 'u8[131072]{0}', space=vmem, size = 0x20000, scoped, tag = 'input window, operand 2, single buffered']
    #allocation8 [shape = 'u8[32768]{0}', space=vmem, size = 0x8000, scoped, tag = 'input window, operand 4, single buffered']
    #allocation9 [shape = 's32[1]{0}', space=sflag, size = 0x4, scoped, tag = 'scoped memory for tpu_custom_call.1']
    #allocation10 [shape = 'u8[4096]{0}', space=vmem, size = 0x1000, scoped, tag = 'output window, operand 0, single buffered']
    %11 = vsyncpa [#allocation3], 0
    %12 = vsyncpa [#allocation6], 0
    %13 = vsyncpa [#allocation9], 0
    %14 = vsyncpa [#allocation4], 0
    // Predicated region
    $region2: #{tpu_custom_call.1} parent=1 // pred_check
      _
    $region3: #{tpu_custom_call.1} parent=1 // pred_check_branch
      %16 = sbr.rel (0) target = $region5
    $region4: #{tpu_custom_call.1} parent=1 // pred_region
      %s18 = ssub.s32 640, 640
      %19 = vsyncadd [#allocation3], %s18
      %s20 = sshll.u32 [#allocation2], 4
      %s21 = int_to_ptr.vmem [resolvable:$true] %s20
      %26 = dma.hbm_to_vmem [thread:$0]  %s0, 640, %s21, [#allocation3], 128, 128, 8
    $region5: #{tpu_custom_call.1} parent=1 // pred_fallthru
      _
    // Predicated region
    $region6: #{tpu_custom_call.1} parent=1 // pred_check
      _
    $region7: #{tpu_custom_call.1} parent=1 // pred_check_branch
      %28 = sbr.rel (0) target = $region9
    $region8: #{tpu_custom_call.1} parent=1 // pred_region
      %s30 = ssub.s32 4096, 4096
      %31 = vsyncadd [#allocation6], %s30
      %s32 = sshll.u32 [#allocation5], 4
      %s33 = int_to_ptr.vmem [resolvable:$true] %s32
      %38 = dma.hbm_to_vmem [thread:$0]  %s1, 4096, %s33, [#allocation6], 256, 256, 16
    $region9: #{tpu_custom_call.1} parent=1 // pred_fallthru
      _
    // Predicated region
    $region10: #{tpu_custom_call.1} parent=1 // pred_check
      _
    $region11: #{tpu_custom_call.1} parent=1 // pred_check_branch
      %40 = sbr.rel (0) target = $region13
    $region12: #{tpu_custom_call.1} parent=1 // pred_region
      %s42 = ssub.s32 4096, 4096
      %43 = vsyncadd [#allocation6], %s42
      %s44 = sshll.u32 [#allocation7], 4
      %s45 = int_to_ptr.vmem [resolvable:$true] %s44
      %50 = dma.hbm_to_vmem [thread:$0]  %s2, 4096, %s45, [#allocation6], 256, 256, 16
    $region13: #{tpu_custom_call.1} parent=1 // pred_fallthru
      _
    // Predicated region
    $region14: #{tpu_custom_call.1} parent=1 // pred_check
      _
    $region15: #{tpu_custom_call.1} parent=1 // pred_check_branch
      %52 = sbr.rel (0) target = $region17
    $region16: #{tpu_custom_call.1} parent=1 // pred_region
      _
    $region17: #{tpu_custom_call.1} parent=1 // pred_fallthru
      _
    // Predicated region
    $region18: #{tpu_custom_call.1} parent=1 // pred_check
      _
    $region19: #{tpu_custom_call.1} parent=1 // pred_check_branch
      %54 = sbr.rel (0) target = $region21
    $region20: #{tpu_custom_call.1} parent=1 // pred_region
      %s56 = ssub.s32 1024, 1024
      %57 = vsyncadd [#allocation9], %s56
      %s58 = sshll.u32 [#allocation8], 4
      %s59 = int_to_ptr.vmem [resolvable:$true] %s58
      %64 = dma.hbm_to_vmem [thread:$0]  %s4, 1024, %s59, [#allocation9], 64, 64, 4
    $region21: #{tpu_custom_call.1} parent=1 // pred_fallthru
      _
    // Predicated region
    $region22: #{tpu_custom_call.1} parent=1 // pred_check
      _
    $region23: #{tpu_custom_call.1} parent=1 // pred_check_branch
      %66 = sbr.rel (0) target = $region25
    $region24: #{tpu_custom_call.1} parent=1 // pred_region
      _
    $region25: #{tpu_custom_call.1} parent=1 // pred_fallthru
      _
    // Predicated region
    $region26: #{tpu_custom_call.1} parent=1 // pred_check
      _
    $region27: #{tpu_custom_call.1} parent=1 // pred_check_branch
      %68 = sbr.rel (0) target = $region29
    $region28: #{tpu_custom_call.1} parent=1 // pred_region
      %69 = dma.done [#allocation3], 640
    $region29: #{tpu_custom_call.1} parent=1 // pred_fallthru
      _
    // Predicated region
    $region30: #{tpu_custom_call.1} parent=1 // pred_check
      _
    $region31: #{tpu_custom_call.1} parent=1 // pred_check_branch
      %71 = sbr.rel (0) target = $region33
    $region32: #{tpu_custom_call.1} parent=1 // pred_region
      %72 = dma.done [#allocation6], 4096
    $region33: #{tpu_custom_call.1} parent=1 // pred_fallthru
      _
    // Predicated region
    $region34: #{tpu_custom_call.1} parent=1 // pred_check
      _
    $region35: #{tpu_custom_call.1} parent=1 // pred_check_branch
      %74 = sbr.rel (0) target = $region37
    $region36: #{tpu_custom_call.1} parent=1 // pred_region
      %75 = dma.done [#allocation6], 4096
    $region37: #{tpu_custom_call.1} parent=1 // pred_fallthru
      _
    // Predicated region
    $region38: #{tpu_custom_call.1} parent=1 // pred_check
      _
    $region39: #{tpu_custom_call.1} parent=1 // pred_check_branch
      %77 = sbr.rel (0) target = $region41
    $region40: #{tpu_custom_call.1} parent=1 // pred_region
      %78 = dma.done [#allocation9], 1024
    $region41: #{tpu_custom_call.1} parent=1 // pred_fallthru
      _
    %v80 = vld [vmem:[#allocation2] sm:$0xff]
    %v81 = vld [vmem:[#allocation2 + $0x8] sm:$0xff]
    %v82 = vld [vmem:[#allocation2 + $0x10] sm:$0xff]
    %v83 = vld [vmem:[#allocation2 + $0x18] sm:$0xff]
    %v84 = vld [vmem:[#allocation2 + $0x20] sm:$0xff]
    %v85 = vpack.c.bf16 %v81, %v80
    %v86 = vpack.c.bf16 %v83, %v82
    %v87 = vpack.c.bf16 %v84, %v84
    %v88 = vld [vmem:[#allocation5] sm:$0xff]
    %v89 = vld [vmem:[#allocation5 + $0x8] sm:$0xff]
    %v90 = vld [vmem:[#allocation5 + $0x10] sm:$0xff]
    %v91 = vld [vmem:[#allocation5 + $0x18] sm:$0xff]
    %v92 = vld [vmem:[#allocation5 + $0x20] sm:$0xff]
    %v93 = vld [vmem:[#allocation5 + $0x28] sm:$0xff]
    %v94 = vld [vmem:[#allocation5 + $0x30] sm:$0xff]
    %v95 = vld [vmem:[#allocation5 + $0x38] sm:$0xff]
    %v96 = vld [vmem:[#allocation5 + $0x40] sm:$0xff]
    %v97 = vld [vmem:[#allocation5 + $0x48] sm:$0xff]
    %v98 = vld [vmem:[#allocation5 + $0x50] sm:$0xff]
    %v99 = vld [vmem:[#allocation5 + $0x58] sm:$0xff]
    %v100 = vld [vmem:[#allocation5 + $0x60] sm:$0xff]
    %v101 = vld [vmem:[#allocation5 + $0x68] sm:$0xff]
    %v102 = vld [vmem:[#allocation5 + $0x70] sm:$0xff]
    %v103 = vld [vmem:[#allocation5 + $0x78] sm:$0xff]
    %v104 = vld [vmem:[#allocation5 + $0x80] sm:$0xff]
    %v105 = vld [vmem:[#allocation5 + $0x88] sm:$0xff]
    %v106 = vld [vmem:[#allocation5 + $0x90] sm:$0xff]
    %v107 = vld [vmem:[#allocation5 + $0x98] sm:$0xff]
    %v108 = vld [vmem:[#allocation5 + $0xa0] sm:$0xff]
    %v109 = vld [vmem:[#allocation5 + $0xa8] sm:$0xff]
    %v110 = vld [vmem:[#allocation5 + $0xb0] sm:$0xff]
    %v111 = vld [vmem:[#allocation5 + $0xb8] sm:$0xff]
    %v112 = vld [vmem:[#allocation5 + $0xc0] sm:$0xff]
    %v113 = vld [vmem:[#allocation5 + $0xc8] sm:$0xff]
    %v114 = vld [vmem:[#allocation5 + $0xd0] sm:$0xff]
    %v115 = vld [vmem:[#allocation5 + $0xd8] sm:$0xff]
    %v116 = vld [vmem:[#allocation5 + $0xe0] sm:$0xff]
    %v117 = vld [vmem:[#allocation5 + $0xe8] sm:$0xff]
    %v118 = vld [vmem:[#allocation5 + $0xf0] sm:$0xff]
    %v119 = vld [vmem:[#allocation5 + $0xf8] sm:$0xff]
    %v120 = vld [vmem:[%s3] sm:$0xf]
    %v122 = vlaneseq
    %v123 = vshrl.u32 %v122, 7
    %v124 = vsub.s32 0, %v123
    %v125 = vrot.slane %v120, %v124
    %v126 = vlaneseq
    %v127 = vshrl.u32 %v126, 7
    %v128 = vsub.s32 1, %v127
    %v129 = vrot.slane %v120, %v128
    %v130 = vlaneseq
    %v131 = vshrl.u32 %v130, 7
    %v132 = vsub.s32 2, %v131
    %v133 = vrot.slane %v120, %v132
    %v134 = vlaneseq
    %v135 = vshrl.u32 %v134, 7
    %v136 = vsub.s32 3, %v135
    %v137 = vrot.slane %v120, %v136
    %v174 = vunpack.c.l.b16 %v88
    %v175 = vunpack.c.h.b16 %v88
    %v176 = vunpack.c.l.b16 %v89
    %v177 = vunpack.c.h.b16 %v89
    %v178 = vunpack.c.l.b16 %v90
    %v179 = vunpack.c.h.b16 %v90
    %v180 = vunpack.c.l.b16 %v91
    %v181 = vunpack.c.h.b16 %v91
    %v182 = vunpack.c.l.b16 %v92
    %v183 = vunpack.c.h.b16 %v92
    %v184 = vunpack.c.l.b16 %v93
    %v185 = vunpack.c.h.b16 %v93
    %v186 = vunpack.c.l.b16 %v94
    %v187 = vunpack.c.h.b16 %v94
    %v188 = vunpack.c.l.b16 %v95
    %v189 = vunpack.c.h.b16 %v95
    %v190 = vunpack.c.l.b16 %v96
    %v191 = vunpack.c.h.b16 %v96
    %v192 = vunpack.c.l.b16 %v97
    %v193 = vunpack.c.h.b16 %v97
    %v194 = vunpack.c.l.b16 %v98
    %v195 = vunpack.c.h.b16 %v98
    %v196 = vunpack.c.l.b16 %v99
    %v197 = vunpack.c.h.b16 %v99
    %v198 = vunpack.c.l.b16 %v100
    %v199 = vunpack.c.h.b16 %v100
    %v200 = vunpack.c.l.b16 %v101
    %v201 = vunpack.c.h.b16 %v101
    %v202 = vunpack.c.l.b16 %v102
    %v203 = vunpack.c.h.b16 %v102
    %v204 = vunpack.c.l.b16 %v103
    %v205 = vunpack.c.h.b16 %v103
    %v206 = vunpack.c.l.b16 %v104
    %v207 = vunpack.c.h.b16 %v104
    %v208 = vunpack.c.l.b16 %v105
    %v209 = vunpack.c.h.b16 %v105
    %v210 = vunpack.c.l.b16 %v106
    %v211 = vunpack.c.h.b16 %v106
    %v212 = vunpack.c.l.b16 %v107
    %v213 = vunpack.c.h.b16 %v107
    %v214 = vunpack.c.l.b16 %v108
    %v215 = vunpack.c.h.b16 %v108
    %v216 = vunpack.c.l.b16 %v109
    %v217 = vunpack.c.h.b16 %v109
    %v218 = vunpack.c.l.b16 %v110
    %v219 = vunpack.c.h.b16 %v110
    %v220 = vunpack.c.l.b16 %v111
    %v221 = vunpack.c.h.b16 %v111
    %v222 = vunpack.c.l.b16 %v112
    %v223 = vunpack.c.h.b16 %v112
    %v224 = vunpack.c.l.b16 %v113
    %v225 = vunpack.c.h.b16 %v113
    %v226 = vunpack.c.l.b16 %v114
    %v227 = vunpack.c.h.b16 %v114
    %v228 = vunpack.c.l.b16 %v115
    %v229 = vunpack.c.h.b16 %v115
    %v230 = vunpack.c.l.b16 %v116
    %v231 = vunpack.c.h.b16 %v116
    %v232 = vunpack.c.l.b16 %v117
    %v233 = vunpack.c.h.b16 %v117
    %v234 = vunpack.c.l.b16 %v118
    %v235 = vunpack.c.h.b16 %v118
    %v236 = vunpack.c.l.b16 %v119
    %v237 = vunpack.c.h.b16 %v119
    %v238 = vpack.c.b16 %v178, %v174
    %v239 = vpack.c.b16 %v179, %v175
    %v240 = vpack.c.b16 %v180, %v176
    %v241 = vpack.c.b16 %v181, %v177
    %v242 = vpack.c.b16 %v186, %v182
    %v243 = vpack.c.b16 %v187, %v183
    %v244 = vpack.c.b16 %v188, %v184
    %v245 = vpack.c.b16 %v189, %v185
    %v246 = vpack.c.b16 %v194, %v190
    %v247 = vpack.c.b16 %v195, %v191
    %v248 = vpack.c.b16 %v196, %v192
    %v249 = vpack.c.b16 %v197, %v193
    %v250 = vpack.c.b16 %v202, %v198
    %v251 = vpack.c.b16 %v203, %v199
    %v252 = vpack.c.b16 %v204, %v200
    %v253 = vpack.c.b16 %v205, %v201
    %v254 = vpack.c.b16 %v210, %v206
    %v255 = vpack.c.b16 %v211, %v207
    %v256 = vpack.c.b16 %v212, %v208
    %v257 = vpack.c.b16 %v213, %v209
    %v258 = vpack.c.b16 %v218, %v214
    %v259 = vpack.c.b16 %v219, %v215
    %v260 = vpack.c.b16 %v220, %v216
    %v261 = vpack.c.b16 %v221, %v217
    %v262 = vpack.c.b16 %v226, %v222
    %v263 = vpack.c.b16 %v227, %v223
    %v264 = vpack.c.b16 %v228, %v224
    %v265 = vpack.c.b16 %v229, %v225
    %v266 = vpack.c.b16 %v234, %v230
    %v267 = vpack.c.b16 %v235, %v231
    %v268 = vpack.c.b16 %v236, %v232
    %v269 = vpack.c.b16 %v237, %v233
    %302 = vmatprep.subr.bf16.mxu0 %v239
    %303 = vmatpush1.bf16.msra.mxu0 %v238
    %304 = vmatprep.subr.bf16.mxu0 %v243
    %305 = vmatpush1.bf16.msra.mxu0 %v242
    %306 = vmatprep.subr.bf16.mxu0 %v247
    %307 = vmatpush1.bf16.msra.mxu0 %v246
    %308 = vmatprep.subr.bf16.mxu0 %v251
    %309 = vmatpush1.bf16.msra.mxu0 %v250
    %310 = vmatprep.subr.bf16.mxu0 %v255
    %311 = vmatpush1.bf16.msra.mxu0 %v254
    %312 = vmatprep.subr.bf16.mxu0 %v259
    %313 = vmatpush1.bf16.msra.mxu0 %v258
    %314 = vmatprep.subr.bf16.mxu0 %v263
    %315 = vmatpush1.bf16.msra.mxu0 %v262
    %316 = vmatprep.subr.bf16.mxu0 %v267
    %317 = vmatpush1.bf16.msra.mxu0 %v266
    %318 = vmatprep.subr.bf16.mxu0 0
    %319 = vmatpush1.bf16.msra.mxu0 0
    %320 = vmatprep.subr.bf16.mxu0 0
    %321 = vmatpush1.bf16.msra.mxu0 0
    %322 = vmatprep.subr.bf16.mxu0 0
    %323 = vmatpush1.bf16.msra.mxu0 0
    %324 = vmatprep.subr.bf16.mxu0 0
    %325 = vmatpush1.bf16.msra.mxu0 0
    %326 = vmatprep.subr.bf16.mxu0 0
    %327 = vmatpush1.bf16.msra.mxu0 0
    %328 = vmatprep.subr.bf16.mxu0 0
    %329 = vmatpush1.bf16.msra.mxu0 0
    %330 = vmatprep.subr.bf16.mxu0 0
    %331 = vmatpush1.bf16.msra.mxu0 0
    %332 = vmatprep.subr.bf16.mxu0 0
    %333 = vmatpush1.bf16.msra.mxu0 0
    %334 = vmatprep.mubr.bf16.mxu0 0
    %335 = vmatmul.mubr.bf16.gmra.mrb[0].mxu0 %v85
    %v336 = vpop.f32.mrb[0].mxu0
    %v337 = vadd.f32 %v125, %v336
    %v338 = vpop.f32.mrb[0].mxu0
    %v339 = vadd.f32 %v129, %v338
    %v340 = vpop.f32.mrb[0].mxu0
    %v341 = vadd.f32 %v125, %v340
    %v342 = vpop.f32.mrb[0].mxu0
    %v343 = vadd.f32 %v129, %v342
    %344 = vmatprep.mubr.bf16.mxu0 0
    %345 = vmatmul.mubr.bf16.gmra.mrb[0].mxu0 %v86
    %v346 = vpop.f32.mrb[0].mxu0
    %v347 = vadd.f32 %v125, %v346
    %v348 = vpop.f32.mrb[0].mxu0
    %v349 = vadd.f32 %v129, %v348
    %v350 = vpop.f32.mrb[0].mxu0
    %v351 = vadd.f32 %v125, %v350
    %v352 = vpop.f32.mrb[0].mxu0
    %v353 = vadd.f32 %v129, %v352
    %354 = vmatprep.mubr.bf16.mxu0 0
    %355 = vmatmul.mubr.bf16.gmra.mrb[0].mxu0 %v87
    %v356 = vpop.f32.mrb[0].mxu0
    %v357 = vadd.f32 %v125, %v356
    %v358 = vpop.f32.mrb[0].mxu0
    %v359 = vadd.f32 %v129, %v358
    %v360 = vpop.f32.mrb[0].mxu0
    %v361 = vpop.f32.mrb[0].mxu0
    %362 = vdwg.mxu0
    %363 = vmatprep.subr.bf16.mxu0 %v241
    %364 = vmatpush1.bf16.msra.mxu0 %v240
    %365 = vmatprep.subr.bf16.mxu0 %v245
    %366 = vmatpush1.bf16.msra.mxu0 %v244
    %367 = vmatprep.subr.bf16.mxu0 %v249
    %368 = vmatpush1.bf16.msra.mxu0 %v248
    %369 = vmatprep.subr.bf16.mxu0 %v253
    %370 = vmatpush1.bf16.msra.mxu0 %v252
    %371 = vmatprep.subr.bf16.mxu0 %v257
    %372 = vmatpush1.bf16.msra.mxu0 %v256
    %373 = vmatprep.subr.bf16.mxu0 %v261
    %374 = vmatpush1.bf16.msra.mxu0 %v260
    %375 = vmatprep.subr.bf16.mxu0 %v265
    %376 = vmatpush1.bf16.msra.mxu0 %v264
    %377 = vmatprep.subr.bf16.mxu0 %v269
    %378 = vmatpush1.bf16.msra.mxu0 %v268
    %379 = vmatprep.subr.bf16.mxu0 0
    %380 = vmatpush1.bf16.msra.mxu0 0
    %381 = vmatprep.subr.bf16.mxu0 0
    %382 = vmatpush1.bf16.msra.mxu0 0
    %383 = vmatprep.subr.bf16.mxu0 0
    %384 = vmatpush1.bf16.msra.mxu0 0
    %385 = vmatprep.subr.bf16.mxu0 0
    %386 = vmatpush1.bf16.msra.mxu0 0
    %387 = vmatprep.subr.bf16.mxu0 0
    %388 = vmatpush1.bf16.msra.mxu0 0
    %389 = vmatprep.subr.bf16.mxu0 0
    %390 = vmatpush1.bf16.msra.mxu0 0
    %391 = vmatprep.subr.bf16.mxu0 0
    %392 = vmatpush1.bf16.msra.mxu0 0
    %393 = vmatprep.subr.bf16.mxu0 0
    %394 = vmatpush1.bf16.msra.mxu0 0
    %395 = vmatprep.mubr.bf16.mxu0 0
    %396 = vmatmul.mubr.bf16.gmra.mrb[0].mxu0 %v85
    %v397 = vpop.f32.mrb[0].mxu0
    %v398 = vadd.f32 %v133, %v397
    %v399 = vpop.f32.mrb[0].mxu0
    %v400 = vadd.f32 %v137, %v399
    %v401 = vpop.f32.mrb[0].mxu0
    %v402 = vadd.f32 %v133, %v401
    %v403 = vpop.f32.mrb[0].mxu0
    %v404 = vadd.f32 %v137, %v403
    %405 = vmatprep.mubr.bf16.mxu0 0
    %406 = vmatmul.mubr.bf16.gmra.mrb[0].mxu0 %v86
    %v407 = vpop.f32.mrb[0].mxu0
    %v408 = vadd.f32 %v133, %v407
    %v409 = vpop.f32.mrb[0].mxu0
    %v410 = vadd.f32 %v137, %v409
    %v411 = vpop.f32.mrb[0].mxu0
    %v412 = vadd.f32 %v133, %v411
    %v413 = vpop.f32.mrb[0].mxu0
    %v414 = vadd.f32 %v137, %v413
    %415 = vmatprep.mubr.bf16.mxu0 0
    %416 = vmatmul.mubr.bf16.gmra.mrb[0].mxu0 %v87
    %v417 = vpop.f32.mrb[0].mxu0
    %v418 = vadd.f32 %v133, %v417
    %v419 = vpop.f32.mrb[0].mxu0
    %v420 = vadd.f32 %v137, %v419
    %v421 = vpop.f32.mrb[0].mxu0
    %v422 = vpop.f32.mrb[0].mxu0
    %423 = vdwg.mxu0
    %v424 = vld [vmem:[#allocation7] sm:$0xff]
    %v425 = vld [vmem:[#allocation7 + $0x8] sm:$0xff]
    %v426 = vld [vmem:[#allocation7 + $0x10] sm:$0xff]
    %v427 = vld [vmem:[#allocation7 + $0x18] sm:$0xff]
    %v428 = vld [vmem:[#allocation7 + $0x20] sm:$0xff]
    %v429 = vld [vmem:[#allocation7 + $0x28] sm:$0xff]
    %v430 = vld [vmem:[#allocation7 + $0x30] sm:$0xff]
    %v431 = vld [vmem:[#allocation7 + $0x38] sm:$0xff]
    %v432 = vld [vmem:[#allocation7 + $0x40] sm:$0xff]
    %v433 = vld [vmem:[#allocation7 + $0x48] sm:$0xff]
    %v434 = vld [vmem:[#allocation7 + $0x50] sm:$0xff]
    %v435 = vld [vmem:[#allocation7 + $0x58] sm:$0xff]
    %v436 = vld [vmem:[#allocation7 + $0x60] sm:$0xff]
    %v437 = vld [vmem:[#allocation7 + $0x68] sm:$0xff]
    %v438 = vld [vmem:[#allocation7 + $0x70] sm:$0xff]
    %v439 = vld [vmem:[#allocation7 + $0x78] sm:$0xff]
    %v440 = vld [vmem:[#allocation7 + $0x80] sm:$0xff]
    %v441 = vld [vmem:[#allocation7 + $0x88] sm:$0xff]
    %v442 = vld [vmem:[#allocation7 + $0x90] sm:$0xff]
    %v443 = vld [vmem:[#allocation7 + $0x98] sm:$0xff]
    %v444 = vld [vmem:[#allocation7 + $0xa0] sm:$0xff]
    %v445 = vld [vmem:[#allocation7 + $0xa8] sm:$0xff]
    %v446 = vld [vmem:[#allocation7 + $0xb0] sm:$0xff]
    %v447 = vld [vmem:[#allocation7 + $0xb8] sm:$0xff]
    %v448 = vld [vmem:[#allocation7 + $0xc0] sm:$0xff]
    %v449 = vld [vmem:[#allocation7 + $0xc8] sm:$0xff]
    %v450 = vld [vmem:[#allocation7 + $0xd0] sm:$0xff]
    %v451 = vld [vmem:[#allocation7 + $0xd8] sm:$0xff]
    %v452 = vld [vmem:[#allocation7 + $0xe0] sm:$0xff]
    %v453 = vld [vmem:[#allocation7 + $0xe8] sm:$0xff]
    %v454 = vld [vmem:[#allocation7 + $0xf0] sm:$0xff]
    %v455 = vld [vmem:[#allocation7 + $0xf8] sm:$0xff]
    %v488 = vunpack.c.l.b16 %v424
    %v489 = vunpack.c.h.b16 %v424
    %v490 = vunpack.c.l.b16 %v425
    %v491 = vunpack.c.h.b16 %v425
    %v492 = vunpack.c.l.b16 %v426
    %v493 = vunpack.c.h.b16 %v426
    %v494 = vunpack.c.l.b16 %v427
    %v495 = vunpack.c.h.b16 %v427
    %v496 = vunpack.c.l.b16 %v428
    %v497 = vunpack.c.h.b16 %v428
    %v498 = vunpack.c.l.b16 %v429
    %v499 = vunpack.c.h.b16 %v429
    %v500 = vunpack.c.l.b16 %v430
    %v501 = vunpack.c.h.b16 %v430
    %v502 = vunpack.c.l.b16 %v431
    %v503 = vunpack.c.h.b16 %v431
    %v504 = vunpack.c.l.b16 %v432
    %v505 = vunpack.c.h.b16 %v432
    %v506 = vunpack.c.l.b16 %v433
    %v507 = vunpack.c.h.b16 %v433
    %v508 = vunpack.c.l.b16 %v434
    %v509 = vunpack.c.h.b16 %v434
    %v510 = vunpack.c.l.b16 %v435
    %v511 = vunpack.c.h.b16 %v435
    %v512 = vunpack.c.l.b16 %v436
    %v513 = vunpack.c.h.b16 %v436
    %v514 = vunpack.c.l.b16 %v437
    %v515 = vunpack.c.h.b16 %v437
    %v516 = vunpack.c.l.b16 %v438
    %v517 = vunpack.c.h.b16 %v438
    %v518 = vunpack.c.l.b16 %v439
    %v519 = vunpack.c.h.b16 %v439
    %v520 = vunpack.c.l.b16 %v440
    %v521 = vunpack.c.h.b16 %v440
    %v522 = vunpack.c.l.b16 %v441
    %v523 = vunpack.c.h.b16 %v441
    %v524 = vunpack.c.l.b16 %v442
    %v525 = vunpack.c.h.b16 %v442
    %v526 = vunpack.c.l.b16 %v443
    %v527 = vunpack.c.h.b16 %v443
    %v528 = vunpack.c.l.b16 %v444
    %v529 = vunpack.c.h.b16 %v444
    %v530 = vunpack.c.l.b16 %v445
    %v531 = vunpack.c.h.b16 %v445
    %v532 = vunpack.c.l.b16 %v446
    %v533 = vunpack.c.h.b16 %v446
    %v534 = vunpack.c.l.b16 %v447
    %v535 = vunpack.c.h.b16 %v447
    %v536 = vunpack.c.l.b16 %v448
    %v537 = vunpack.c.h.b16 %v448
    %v538 = vunpack.c.l.b16 %v449
    %v539 = vunpack.c.h.b16 %v449
    %v540 = vunpack.c.l.b16 %v450
    %v541 = vunpack.c.h.b16 %v450
    %v542 = vunpack.c.l.b16 %v451
    %v543 = vunpack.c.h.b16 %v451
    %v544 = vunpack.c.l.b16 %v452
    %v545 = vunpack.c.h.b16 %v452
    %v546 = vunpack.c.l.b16 %v453
    %v547 = vunpack.c.h.b16 %v453
    %v548 = vunpack.c.l.b16 %v454
    %v549 = vunpack.c.h.b16 %v454
    %v550 = vunpack.c.l.b16 %v455
    %v551 = vunpack.c.h.b16 %v455
    %v552 = vpack.c.b16 %v492, %v488
    %v553 = vpack.c.b16 %v493, %v489
    %v554 = vpack.c.b16 %v494, %v490
    %v555 = vpack.c.b16 %v495, %v491
    %v556 = vpack.c.b16 %v500, %v496
    %v557 = vpack.c.b16 %v501, %v497
    %v558 = vpack.c.b16 %v502, %v498
    %v559 = vpack.c.b16 %v503, %v499
    %v560 = vpack.c.b16 %v508, %v504
    %v561 = vpack.c.b16 %v509, %v505
    %v562 = vpack.c.b16 %v510, %v506
    %v563 = vpack.c.b16 %v511, %v507
    %v564 = vpack.c.b16 %v516, %v512
    %v565 = vpack.c.b16 %v517, %v513
    %v566 = vpack.c.b16 %v518, %v514
    %v567 = vpack.c.b16 %v519, %v515
    %v568 = vpack.c.b16 %v524, %v520
    %v569 = vpack.c.b16 %v525, %v521
    %v570 = vpack.c.b16 %v526, %v522
    %v571 = vpack.c.b16 %v527, %v523
    %v572 = vpack.c.b16 %v532, %v528
    %v573 = vpack.c.b16 %v533, %v529
    %v574 = vpack.c.b16 %v534, %v530
    %v575 = vpack.c.b16 %v535, %v531
    %v576 = vpack.c.b16 %v540, %v536
    %v577 = vpack.c.b16 %v541, %v537
    %v578 = vpack.c.b16 %v542, %v538
    %v579 = vpack.c.b16 %v543, %v539
    %v580 = vpack.c.b16 %v548, %v544
    %v581 = vpack.c.b16 %v549, %v545
    %v582 = vpack.c.b16 %v550, %v546
    %v583 = vpack.c.b16 %v551, %v547
    %616 = vmatprep.subr.bf16.mxu0 %v553
    %617 = vmatpush1.bf16.msra.mxu0 %v552
    %618 = vmatprep.subr.bf16.mxu0 %v557
    %619 = vmatpush1.bf16.msra.mxu0 %v556
    %620 = vmatprep.subr.bf16.mxu0 %v561
    %621 = vmatpush1.bf16.msra.mxu0 %v560
    %622 = vmatprep.subr.bf16.mxu0 %v565
    %623 = vmatpush1.bf16.msra.mxu0 %v564
    %624 = vmatprep.subr.bf16.mxu0 %v569
    %625 = vmatpush1.bf16.msra.mxu0 %v568
    %626 = vmatprep.subr.bf16.mxu0 %v573
    %627 = vmatpush1.bf16.msra.mxu0 %v572
    %628 = vmatprep.subr.bf16.mxu0 %v577
    %629 = vmatpush1.bf16.msra.mxu0 %v576
    %630 = vmatprep.subr.bf16.mxu0 %v581
    %631 = vmatpush1.bf16.msra.mxu0 %v580
    %632 = vmatprep.subr.bf16.mxu0 0
    %633 = vmatpush1.bf16.msra.mxu0 0
    %634 = vmatprep.subr.bf16.mxu0 0
    %635 = vmatpush1.bf16.msra.mxu0 0
    %636 = vmatprep.subr.bf16.mxu0 0
    %637 = vmatpush1.bf16.msra.mxu0 0
    %638 = vmatprep.subr.bf16.mxu0 0
    %639 = vmatpush1.bf16.msra.mxu0 0
    %640 = vmatprep.subr.bf16.mxu0 0
    %641 = vmatpush1.bf16.msra.mxu0 0
    %642 = vmatprep.subr.bf16.mxu0 0
    %643 = vmatpush1.bf16.msra.mxu0 0
    %644 = vmatprep.subr.bf16.mxu0 0
    %645 = vmatpush1.bf16.msra.mxu0 0
    %646 = vmatprep.subr.bf16.mxu0 0
    %647 = vmatpush1.bf16.msra.mxu0 0
    %648 = vmatprep.mubr.bf16.mxu0 0
    %649 = vmatmul.mubr.bf16.gmra.mrb[0].mxu0 0
    %v650 = vpop.f32.mrb[0].mxu0
    %v651 = vadd.f32 0.0, %v650
    %v652 = vpop.f32.mrb[0].mxu0
    %v653 = vadd.f32 0.0, %v652
    %v654 = vpop.f32.mrb[0].mxu0
    %v655 = vpop.f32.mrb[0].mxu0
    %656 = vdwg.mxu0
    %657 = vmatprep.subr.bf16.mxu0 %v555
    %658 = vmatpush1.bf16.msra.mxu0 %v554
    %659 = vmatprep.subr.bf16.mxu0 %v559
    %660 = vmatpush1.bf16.msra.mxu0 %v558
    %661 = vmatprep.subr.bf16.mxu0 %v563
    %662 = vmatpush1.bf16.msra.mxu0 %v562
    %663 = vmatprep.subr.bf16.mxu0 %v567
    %664 = vmatpush1.bf16.msra.mxu0 %v566
    %665 = vmatprep.subr.bf16.mxu0 %v571
    %666 = vmatpush1.bf16.msra.mxu0 %v570
    %667 = vmatprep.subr.bf16.mxu0 %v575
    %668 = vmatpush1.bf16.msra.mxu0 %v574
    %669 = vmatprep.subr.bf16.mxu0 %v579
    %670 = vmatpush1.bf16.msra.mxu0 %v578
    %671 = vmatprep.subr.bf16.mxu0 %v583
    %672 = vmatpush1.bf16.msra.mxu0 %v582
    %673 = vmatprep.subr.bf16.mxu0 0
    %674 = vmatpush1.bf16.msra.mxu0 0
    %675 = vmatprep.subr.bf16.mxu0 0
    %676 = vmatpush1.bf16.msra.mxu0 0
    %677 = vmatprep.subr.bf16.mxu0 0
    %678 = vmatpush1.bf16.msra.mxu0 0
    %679 = vmatprep.subr.bf16.mxu0 0
    %680 = vmatpush1.bf16.msra.mxu0 0
    %681 = vmatprep.subr.bf16.mxu0 0
    %682 = vmatpush1.bf16.msra.mxu0 0
    %683 = vmatprep.subr.bf16.mxu0 0
    %684 = vmatpush1.bf16.msra.mxu0 0
    %685 = vmatprep.subr.bf16.mxu0 0
    %686 = vmatpush1.bf16.msra.mxu0 0
    %687 = vmatprep.subr.bf16.mxu0 0
    %688 = vmatpush1.bf16.msra.mxu0 0
    %689 = vmatprep.mubr.bf16.mxu0 0
    %690 = vmatmul.mubr.bf16.gmra.mrb[0].mxu0 0
    %v691 = vpop.f32.mrb[0].mxu0
    %v692 = vadd.f32 0.0, %v691
    %v693 = vpop.f32.mrb[0].mxu0
    %v694 = vadd.f32 0.0, %v693
    %v695 = vpop.f32.mrb[0].mxu0
    %v696 = vpop.f32.mrb[0].mxu0
    %697 = vdwg.mxu0
    %v698 = vadd.f32 %v337, %v651
    %v699 = vadd.f32 %v339, %v653
    %v700 = vadd.f32 %v398, %v692
    %v701 = vadd.f32 %v400, %v694
    %v702 = vxor.u32 %v698, 2147483648
    %v703 = vxor.u32 %v699, 2147483648
    %v704 = vxor.u32 %v700, 2147483648
    %v705 = vmul.f32 %v702, 1.442695
    %v706 = vpow.pop %v705
    %v707 = vmul.f32 %v703, 1.442695
    %v708 = vpow.pop %v707
    %v709 = vmul.f32 %v704, 1.442695
    %v710 = vpow.pop %v709
    %v711 = vadd.f32 %v706, 1.0
    %v712 = vadd.f32 %v708, 1.0
    %v713 = vadd.f32 %v710, 1.0
    %v714 = vrcp.pop %v711
    %v715 = vmul.f32 1.0, %v714
    %v716 = vrcp.pop %v712
    %v717 = vmul.f32 1.0, %v716
    %v718 = vrcp.pop %v713
    %v719 = vmul.f32 1.0, %v718
    %v720 = vtanh.pop %v701
    %v721 = vmul.f32 %v717, 0.0
    %v722 = vmul.f32 %v715, %v720
    %v723 = vadd.f32 %v721, %v722
    %v724 = vtanh.pop %v723
    %v725 = vmul.f32 %v719, %v724
    %v726 = vpack.c.bf16 %v725, %v725
    %727 = vmatprep.subr.bf16.mxu0 %v553
    %728 = vmatpush1.bf16.msra.mxu0 %v552
    %729 = vmatprep.subr.bf16.mxu0 %v557
    %730 = vmatpush1.bf16.msra.mxu0 %v556
    %731 = vmatprep.subr.bf16.mxu0 %v561
    %732 = vmatpush1.bf16.msra.mxu0 %v560
    %733 = vmatprep.subr.bf16.mxu0 %v565
    %734 = vmatpush1.bf16.msra.mxu0 %v564
    %735 = vmatprep.subr.bf16.mxu0 %v569
    %736 = vmatpush1.bf16.msra.mxu0 %v568
    %737 = vmatprep.subr.bf16.mxu0 %v573
    %738 = vmatpush1.bf16.msra.mxu0 %v572
    %739 = vmatprep.subr.bf16.mxu0 %v577
    %740 = vmatpush1.bf16.msra.mxu0 %v576
    %741 = vmatprep.subr.bf16.mxu0 %v581
    %742 = vmatpush1.bf16.msra.mxu0 %v580
    %743 = vmatprep.subr.bf16.mxu0 0
    %744 = vmatpush1.bf16.msra.mxu0 0
    %745 = vmatprep.subr.bf16.mxu0 0
    %746 = vmatpush1.bf16.msra.mxu0 0
    %747 = vmatprep.subr.bf16.mxu0 0
    %748 = vmatpush1.bf16.msra.mxu0 0
    %749 = vmatprep.subr.bf16.mxu0 0
    %750 = vmatpush1.bf16.msra.mxu0 0
    %751 = vmatprep.subr.bf16.mxu0 0
    %752 = vmatpush1.bf16.msra.mxu0 0
    %753 = vmatprep.subr.bf16.mxu0 0
    %754 = vmatpush1.bf16.msra.mxu0 0
    %755 = vmatprep.subr.bf16.mxu0 0
    %756 = vmatpush1.bf16.msra.mxu0 0
    %757 = vmatprep.subr.bf16.mxu0 0
    %758 = vmatpush1.bf16.msra.mxu0 0
    %759 = vmatprep.mubr.bf16.mxu0 0
    %760 = vmatmul.mubr.bf16.gmra.mrb[0].mxu0 %v726
    %v761 = vpop.f32.mrb[0].mxu0
    %v762 = vadd.f32 0.0, %v761
    %v763 = vpop.f32.mrb[0].mxu0
    %v764 = vadd.f32 0.0, %v763
    %v765 = vpop.f32.mrb[0].mxu0
    %v766 = vpop.f32.mrb[0].mxu0
    %767 = vdwg.mxu0
    %768 = vmatprep.subr.bf16.mxu0 %v555
    %769 = vmatpush1.bf16.msra.mxu0 %v554
    %770 = vmatprep.subr.bf16.mxu0 %v559
    %771 = vmatpush1.bf16.msra.mxu0 %v558
    %772 = vmatprep.subr.bf16.mxu0 %v563
    %773 = vmatpush1.bf16.msra.mxu0 %v562
    %774 = vmatprep.subr.bf16.mxu0 %v567
    %775 = vmatpush1.bf16.msra.mxu0 %v566
    %776 = vmatprep.subr.bf16.mxu0 %v571
    %777 = vmatpush1.bf16.msra.mxu0 %v570
    %778 = vmatprep.subr.bf16.mxu0 %v575
    %779 = vmatpush1.bf16.msra.mxu0 %v574
    %780 = vmatprep.subr.bf16.mxu0 %v579
    %781 = vmatpush1.bf16.msra.mxu0 %v578
    %782 = vmatprep.subr.bf16.mxu0 %v583
    %783 = vmatpush1.bf16.msra.mxu0 %v582
    %784 = vmatprep.subr.bf16.mxu0 0
    %785 = vmatpush1.bf16.msra.mxu0 0
    %786 = vmatprep.subr.bf16.mxu0 0
    %787 = vmatpush1.bf16.msra.mxu0 0
    %788 = vmatprep.subr.bf16.mxu0 0
    %789 = vmatpush1.bf16.msra.mxu0 0
    %790 = vmatprep.subr.bf16.mxu0 0
    %791 = vmatpush1.bf16.msra.mxu0 0
    %792 = vmatprep.subr.bf16.mxu0 0
    %793 = vmatpush1.bf16.msra.mxu0 0
    %794 = vmatprep.subr.bf16.mxu0 0
    %795 = vmatpush1.bf16.msra.mxu0 0
    %796 = vmatprep.subr.bf16.mxu0 0
    %797 = vmatpush1.bf16.msra.mxu0 0
    %798 = vmatprep.subr.bf16.mxu0 0
    %799 = vmatpush1.bf16.msra.mxu0 0
    %800 = vmatprep.mubr.bf16.mxu0 0
    %801 = vmatmul.mubr.bf16.gmra.mrb[0].mxu0 %v726
    %v802 = vpop.f32.mrb[0].mxu0
    %v803 = vadd.f32 0.0, %v802
    %v804 = vpop.f32.mrb[0].mxu0
    %v805 = vadd.f32 0.0, %v804
    %v806 = vpop.f32.mrb[0].mxu0
    %v807 = vpop.f32.mrb[0].mxu0
    %808 = vdwg.mxu0
    %v809 = vadd.f32 %v341, %v762
    %v810 = vadd.f32 %v343, %v764
    %v811 = vadd.f32 %v402, %v803
    %v812 = vadd.f32 %v404, %v805
    %v813 = vxor.u32 %v809, 2147483648
    %v814 = vxor.u32 %v810, 2147483648
    %v815 = vxor.u32 %v811, 2147483648
    %v816 = vmul.f32 %v813, 1.442695
    %v817 = vpow.pop %v816
    %v818 = vmul.f32 %v814, 1.442695
    %v819 = vpow.pop %v818
    %v820 = vmul.f32 %v815, 1.442695
    %v821 = vpow.pop %v820
    %v822 = vadd.f32 %v817, 1.0
    %v823 = vadd.f32 %v819, 1.0
    %v824 = vadd.f32 %v821, 1.0
    %v825 = vrcp.pop %v822
    %v826 = vmul.f32 1.0, %v825
    %v827 = vrcp.pop %v823
    %v828 = vmul.f32 1.0, %v827
    %v829 = vrcp.pop %v824
    %v830 = vmul.f32 1.0, %v829
    %v831 = vtanh.pop %v812
    %v832 = vmul.f32 %v828, %v723
    %v833 = vmul.f32 %v826, %v831
    %v834 = vadd.f32 %v832, %v833
    %v835 = vtanh.pop %v834
    %v836 = vmul.f32 %v830, %v835
    %v837 = vpack.c.bf16 %v836, %v836
    %838 = vmatprep.subr.bf16.mxu0 %v553
    %839 = vmatpush1.bf16.msra.mxu0 %v552
    %840 = vmatprep.subr.bf16.mxu0 %v557
    %841 = vmatpush1.bf16.msra.mxu0 %v556
    %842 = vmatprep.subr.bf16.mxu0 %v561
    %843 = vmatpush1.bf16.msra.mxu0 %v560
    %844 = vmatprep.subr.bf16.mxu0 %v565
    %845 = vmatpush1.bf16.msra.mxu0 %v564
    %846 = vmatprep.subr.bf16.mxu0 %v569
    %847 = vmatpush1.bf16.msra.mxu0 %v568
    %848 = vmatprep.subr.bf16.mxu0 %v573
    %849 = vmatpush1.bf16.msra.mxu0 %v572
    %850 = vmatprep.subr.bf16.mxu0 %v577
    %851 = vmatpush1.bf16.msra.mxu0 %v576
    %852 = vmatprep.subr.bf16.mxu0 %v581
    %853 = vmatpush1.bf16.msra.mxu0 %v580
    %854 = vmatprep.subr.bf16.mxu0 0
    %855 = vmatpush1.bf16.msra.mxu0 0
    %856 = vmatprep.subr.bf16.mxu0 0
    %857 = vmatpush1.bf16.msra.mxu0 0
    %858 = vmatprep.subr.bf16.mxu0 0
    %859 = vmatpush1.bf16.msra.mxu0 0
    %860 = vmatprep.subr.bf16.mxu0 0
    %861 = vmatpush1.bf16.msra.mxu0 0
    %862 = vmatprep.subr.bf16.mxu0 0
    %863 = vmatpush1.bf16.msra.mxu0 0
    %864 = vmatprep.subr.bf16.mxu0 0
    %865 = vmatpush1.bf16.msra.mxu0 0
    %866 = vmatprep.subr.bf16.mxu0 0
    %867 = vmatpush1.bf16.msra.mxu0 0
    %868 = vmatprep.subr.bf16.mxu0 0
    %869 = vmatpush1.bf16.msra.mxu0 0
    %870 = vmatprep.mubr.bf16.mxu0 0
    %871 = vmatmul.mubr.bf16.gmra.mrb[0].mxu0 %v837
    %v872 = vpop.f32.mrb[0].mxu0
    %v873 = vadd.f32 0.0, %v872
    %v874 = vpop.f32.mrb[0].mxu0
    %v875 = vadd.f32 0.0, %v874
    %v876 = vpop.f32.mrb[0].mxu0
    %v877 = vpop.f32.mrb[0].mxu0
    %878 = vdwg.mxu0
    %879 = vmatprep.subr.bf16.mxu0 %v555
    %880 = vmatpush1.bf16.msra.mxu0 %v554
    %881 = vmatprep.subr.bf16.mxu0 %v559
    %882 = vmatpush1.bf16.msra.mxu0 %v558
    %883 = vmatprep.subr.bf16.mxu0 %v563
    %884 = vmatpush1.bf16.msra.mxu0 %v562
    %885 = vmatprep.subr.bf16.mxu0 %v567
    %886 = vmatpush1.bf16.msra.mxu0 %v566
    %887 = vmatprep.subr.bf16.mxu0 %v571
    %888 = vmatpush1.bf16.msra.mxu0 %v570
    %889 = vmatprep.subr.bf16.mxu0 %v575
    %890 = vmatpush1.bf16.msra.mxu0 %v574
    %891 = vmatprep.subr.bf16.mxu0 %v579
    %892 = vmatpush1.bf16.msra.mxu0 %v578
    %893 = vmatprep.subr.bf16.mxu0 %v583
    %894 = vmatpush1.bf16.msra.mxu0 %v582
    %895 = vmatprep.subr.bf16.mxu0 0
    %896 = vmatpush1.bf16.msra.mxu0 0
    %897 = vmatprep.subr.bf16.mxu0 0
    %898 = vmatpush1.bf16.msra.mxu0 0
    %899 = vmatprep.subr.bf16.mxu0 0
    %900 = vmatpush1.bf16.msra.mxu0 0
    %901 = vmatprep.subr.bf16.mxu0 0
    %902 = vmatpush1.bf16.msra.mxu0 0
    %903 = vmatprep.subr.bf16.mxu0 0
    %904 = vmatpush1.bf16.msra.mxu0 0
    %905 = vmatprep.subr.bf16.mxu0 0
    %906 = vmatpush1.bf16.msra.mxu0 0
    %907 = vmatprep.subr.bf16.mxu0 0
    %908 = vmatpush1.bf16.msra.mxu0 0
    %909 = vmatprep.subr.bf16.mxu0 0
    %910 = vmatpush1.bf16.msra.mxu0 0
    %911 = vmatprep.mubr.bf16.mxu0 0
    %912 = vmatmul.mubr.bf16.gmra.mrb[0].mxu0 %v837
    %v913 = vpop.f32.mrb[0].mxu0
    %v914 = vadd.f32 0.0, %v913
    %v915 = vpop.f32.mrb[0].mxu0
    %v916 = vadd.f32 0.0, %v915
    %v917 = vpop.f32.mrb[0].mxu0
    %v918 = vpop.f32.mrb[0].mxu0
    %919 = vdwg.mxu0
    %v920 = vadd.f32 %v347, %v873
    %v921 = vadd.f32 %v349, %v875
    %v922 = vadd.f32 %v408, %v914
    %v923 = vadd.f32 %v410, %v916
    %v924 = vxor.u32 %v920, 2147483648
    %v925 = vxor.u32 %v921, 2147483648
    %v926 = vxor.u32 %v922, 2147483648
    %v927 = vmul.f32 %v924, 1.442695
    %v928 = vpow.pop %v927
    %v929 = vmul.f32 %v925, 1.442695
    %v930 = vpow.pop %v929
    %v931 = vmul.f32 %v926, 1.442695
    %v932 = vpow.pop %v931
    %v933 = vadd.f32 %v928, 1.0
    %v934 = vadd.f32 %v930, 1.0
    %v935 = vadd.f32 %v932, 1.0
    %v936 = vrcp.pop %v933
    %v937 = vmul.f32 1.0, %v936
    %v938 = vrcp.pop %v934
    %v939 = vmul.f32 1.0, %v938
    %v940 = vrcp.pop %v935
    %v941 = vmul.f32 1.0, %v940
    %v942 = vtanh.pop %v923
    %v943 = vmul.f32 %v939, %v834
    %v944 = vmul.f32 %v937, %v942
    %v945 = vadd.f32 %v943, %v944
    %v946 = vtanh.pop %v945
    %v947 = vmul.f32 %v941, %v946
    %v948 = vpack.c.bf16 %v947, %v947
    %949 = vmatprep.subr.bf16.mxu0 %v553
    %950 = vmatpush1.bf16.msra.mxu0 %v552
    %951 = vmatprep.subr.bf16.mxu0 %v557
    %952 = vmatpush1.bf16.msra.mxu0 %v556
    %953 = vmatprep.subr.bf16.mxu0 %v561
    %954 = vmatpush1.bf16.msra.mxu0 %v560
    %955 = vmatprep.subr.bf16.mxu0 %v565
    %956 = vmatpush1.bf16.msra.mxu0 %v564
    %957 = vmatprep.subr.bf16.mxu0 %v569
    %958 = vmatpush1.bf16.msra.mxu0 %v568
    %959 = vmatprep.subr.bf16.mxu0 %v573
    %960 = vmatpush1.bf16.msra.mxu0 %v572
    %961 = vmatprep.subr.bf16.mxu0 %v577
    %962 = vmatpush1.bf16.msra.mxu0 %v576
    %963 = vmatprep.subr.bf16.mxu0 %v581
    %964 = vmatpush1.bf16.msra.mxu0 %v580
    %965 = vmatprep.subr.bf16.mxu0 0
    %966 = vmatpush1.bf16.msra.mxu0 0
    %967 = vmatprep.subr.bf16.mxu0 0
    %968 = vmatpush1.bf16.msra.mxu0 0
    %969 = vmatprep.subr.bf16.mxu0 0
    %970 = vmatpush1.bf16.msra.mxu0 0
    %971 = vmatprep.subr.bf16.mxu0 0
    %972 = vmatpush1.bf16.msra.mxu0 0
    %973 = vmatprep.subr.bf16.mxu0 0
    %974 = vmatpush1.bf16.msra.mxu0 0
    %975 = vmatprep.subr.bf16.mxu0 0
    %976 = vmatpush1.bf16.msra.mxu0 0
    %977 = vmatprep.subr.bf16.mxu0 0
    %978 = vmatpush1.bf16.msra.mxu0 0
    %979 = vmatprep.subr.bf16.mxu0 0
    %980 = vmatpush1.bf16.msra.mxu0 0
    %981 = vmatprep.mubr.bf16.mxu0 0
    %982 = vmatmul.mubr.bf16.gmra.mrb[0].mxu0 %v948
    %v983 = vpop.f32.mrb[0].mxu0
    %v984 = vadd.f32 0.0, %v983
    %v985 = vpop.f32.mrb[0].mxu0
    %v986 = vadd.f32 0.0, %v985
    %v987 = vpop.f32.mrb[0].mxu0
    %v988 = vpop.f32.mrb[0].mxu0
    %989 = vdwg.mxu0
    %990 = vmatprep.subr.bf16.mxu0 %v555
    %991 = vmatpush1.bf16.msra.mxu0 %v554
    %992 = vmatprep.subr.bf16.mxu0 %v559
    %993 = vmatpush1.bf16.msra.mxu0 %v558
    %994 = vmatprep.subr.bf16.mxu0 %v563
    %995 = vmatpush1.bf16.msra.mxu0 %v562
    %996 = vmatprep.subr.bf16.mxu0 %v567
    %997 = vmatpush1.bf16.msra.mxu0 %v566
    %998 = vmatprep.subr.bf16.mxu0 %v571
    %999 = vmatpush1.bf16.msra.mxu0 %v570
    %1000 = vmatprep.subr.bf16.mxu0 %v575
    %1001 = vmatpush1.bf16.msra.mxu0 %v574
    %1002 = vmatprep.subr.bf16.mxu0 %v579
    %1003 = vmatpush1.bf16.msra.mxu0 %v578
    %1004 = vmatprep.subr.bf16.mxu0 %v583
    %1005 = vmatpush1.bf16.msra.mxu0 %v582
    %1006 = vmatprep.subr.bf16.mxu0 0
    %1007 = vmatpush1.bf16.msra.mxu0 0
    %1008 = vmatprep.subr.bf16.mxu0 0
    %1009 = vmatpush1.bf16.msra.mxu0 0
    %1010 = vmatprep.subr.bf16.mxu0 0
    %1011 = vmatpush1.bf16.msra.mxu0 0
    %1012 = vmatprep.subr.bf16.mxu0 0
    %1013 = vmatpush1.bf16.msra.mxu0 0
    %1014 = vmatprep.subr.bf16.mxu0 0
    %1015 = vmatpush1.bf16.msra.mxu0 0
    %1016 = vmatprep.subr.bf16.mxu0 0
    %1017 = vmatpush1.bf16.msra.mxu0 0
    %1018 = vmatprep.subr.bf16.mxu0 0
    %1019 = vmatpush1.bf16.msra.mxu0 0
    %1020 = vmatprep.subr.bf16.mxu0 0
    %1021 = vmatpush1.bf16.msra.mxu0 0
    %1022 = vmatprep.mubr.bf16.mxu0 0
    %1023 = vmatmul.mubr.bf16.gmra.mrb[0].mxu0 %v948
    %v1024 = vpop.f32.mrb[0].mxu0
    %v1025 = vadd.f32 0.0, %v1024
    %v1026 = vpop.f32.mrb[0].mxu0
    %v1027 = vadd.f32 0.0, %v1026
    %v1028 = vpop.f32.mrb[0].mxu0
    %v1029 = vpop.f32.mrb[0].mxu0
    %1030 = vdwg.mxu0
    %v1031 = vadd.f32 %v351, %v984
    %v1032 = vadd.f32 %v353, %v986
    %v1033 = vadd.f32 %v412, %v1025
    %v1034 = vadd.f32 %v414, %v1027
    %v1035 = vxor.u32 %v1031, 2147483648
    %v1036 = vxor.u32 %v1032, 2147483648
    %v1037 = vxor.u32 %v1033, 2147483648
    %v1038 = vmul.f32 %v1035, 1.442695
    %v1039 = vpow.pop %v1038
    %v1040 = vmul.f32 %v1036, 1.442695
    %v1041 = vpow.pop %v1040
    %v1042 = vmul.f32 %v1037, 1.442695
    %v1043 = vpow.pop %v1042
    %v1044 = vadd.f32 %v1039, 1.0
    %v1045 = vadd.f32 %v1041, 1.0
    %v1046 = vadd.f32 %v1043, 1.0
    %v1047 = vrcp.pop %v1044
    %v1048 = vmul.f32 1.0, %v1047
    %v1049 = vrcp.pop %v1045
    %v1050 = vmul.f32 1.0, %v1049
    %v1051 = vrcp.pop %v1046
    %v1052 = vmul.f32 1.0, %v1051
    %v1053 = vtanh.pop %v1034
    %v1054 = vmul.f32 %v1050, %v945
    %v1055 = vmul.f32 %v1048, %v1053
    %v1056 = vadd.f32 %v1054, %v1055
    %v1057 = vtanh.pop %v1056
    %v1058 = vmul.f32 %v1052, %v1057
    %v1059 = vpack.c.bf16 %v1058, %v1058
    %1060 = vmatprep.subr.bf16.mxu0 %v553
    %1061 = vmatpush1.bf16.msra.mxu0 %v552
    %1062 = vmatprep.subr.bf16.mxu0 %v557
    %1063 = vmatpush1.bf16.msra.mxu0 %v556
    %1064 = vmatprep.subr.bf16.mxu0 %v561
    %1065 = vmatpush1.bf16.msra.mxu0 %v560
    %1066 = vmatprep.subr.bf16.mxu0 %v565
    %1067 = vmatpush1.bf16.msra.mxu0 %v564
    %1068 = vmatprep.subr.bf16.mxu0 %v569
    %1069 = vmatpush1.bf16.msra.mxu0 %v568
    %1070 = vmatprep.subr.bf16.mxu0 %v573
    %1071 = vmatpush1.bf16.msra.mxu0 %v572
    %1072 = vmatprep.subr.bf16.mxu0 %v577
    %1073 = vmatpush1.bf16.msra.mxu0 %v576
    %1074 = vmatprep.subr.bf16.mxu0 %v581
    %1075 = vmatpush1.bf16.msra.mxu0 %v580
    %1076 = vmatprep.subr.bf16.mxu0 0
    %1077 = vmatpush1.bf16.msra.mxu0 0
    %1078 = vmatprep.subr.bf16.mxu0 0
    %1079 = vmatpush1.bf16.msra.mxu0 0
    %1080 = vmatprep.subr.bf16.mxu0 0
    %1081 = vmatpush1.bf16.msra.mxu0 0
    %1082 = vmatprep.subr.bf16.mxu0 0
    %1083 = vmatpush1.bf16.msra.mxu0 0
    %1084 = vmatprep.subr.bf16.mxu0 0
    %1085 = vmatpush1.bf16.msra.mxu0 0
    %1086 = vmatprep.subr.bf16.mxu0 0
    %1087 = vmatpush1.bf16.msra.mxu0 0
    %1088 = vmatprep.subr.bf16.mxu0 0
    %1089 = vmatpush1.bf16.msra.mxu0 0
    %1090 = vmatprep.subr.bf16.mxu0 0
    %1091 = vmatpush1.bf16.msra.mxu0 0
    %1092 = vmatprep.mubr.bf16.mxu0 0
    %1093 = vmatmul.mubr.bf16.gmra.mrb[0].mxu0 %v1059
    %v1094 = vpop.f32.mrb[0].mxu0
    %v1095 = vadd.f32 0.0, %v1094
    %v1096 = vpop.f32.mrb[0].mxu0
    %v1097 = vadd.f32 0.0, %v1096
    %v1098 = vpop.f32.mrb[0].mxu0
    %v1099 = vpop.f32.mrb[0].mxu0
    %1100 = vdwg.mxu0
    %1101 = vmatprep.subr.bf16.mxu0 %v555
    %1102 = vmatpush1.bf16.msra.mxu0 %v554
    %1103 = vmatprep.subr.bf16.mxu0 %v559
    %1104 = vmatpush1.bf16.msra.mxu0 %v558
    %1105 = vmatprep.subr.bf16.mxu0 %v563
    %1106 = vmatpush1.bf16.msra.mxu0 %v562
    %1107 = vmatprep.subr.bf16.mxu0 %v567
    %1108 = vmatpush1.bf16.msra.mxu0 %v566
    %1109 = vmatprep.subr.bf16.mxu0 %v571
    %1110 = vmatpush1.bf16.msra.mxu0 %v570
    %1111 = vmatprep.subr.bf16.mxu0 %v575
    %1112 = vmatpush1.bf16.msra.mxu0 %v574
    %1113 = vmatprep.subr.bf16.mxu0 %v579
    %1114 = vmatpush1.bf16.msra.mxu0 %v578
    %1115 = vmatprep.subr.bf16.mxu0 %v583
    %1116 = vmatpush1.bf16.msra.mxu0 %v582
    %1117 = vmatprep.subr.bf16.mxu0 0
    %1118 = vmatpush1.bf16.msra.mxu0 0
    %1119 = vmatprep.subr.bf16.mxu0 0
    %1120 = vmatpush1.bf16.msra.mxu0 0
    %1121 = vmatprep.subr.bf16.mxu0 0
    %1122 = vmatpush1.bf16.msra.mxu0 0
    %1123 = vmatprep.subr.bf16.mxu0 0
    %1124 = vmatpush1.bf16.msra.mxu0 0
    %1125 = vmatprep.subr.bf16.mxu0 0
    %1126 = vmatpush1.bf16.msra.mxu0 0
    %1127 = vmatprep.subr.bf16.mxu0 0
    %1128 = vmatpush1.bf16.msra.mxu0 0
    %1129 = vmatprep.subr.bf16.mxu0 0
    %1130 = vmatpush1.bf16.msra.mxu0 0
    %1131 = vmatprep.subr.bf16.mxu0 0
    %1132 = vmatpush1.bf16.msra.mxu0 0
    %1133 = vmatprep.mubr.bf16.mxu0 0
    %1134 = vmatmul.mubr.bf16.gmra.mrb[0].mxu0 %v1059
    %v1135 = vpop.f32.mrb[0].mxu0
    %v1136 = vadd.f32 0.0, %v1135
    %v1137 = vpop.f32.mrb[0].mxu0
    %v1138 = vadd.f32 0.0, %v1137
    %v1139 = vpop.f32.mrb[0].mxu0
    %v1140 = vpop.f32.mrb[0].mxu0
    %1141 = vdwg.mxu0
    %v1142 = vadd.f32 %v357, %v1095
    %v1143 = vadd.f32 %v359, %v1097
    %v1144 = vadd.f32 %v418, %v1136
    %v1145 = vadd.f32 %v420, %v1138
    %v1146 = vxor.u32 %v1142, 2147483648
    %v1147 = vxor.u32 %v1143, 2147483648
    %v1148 = vxor.u32 %v1144, 2147483648
    %v1149 = vmul.f32 %v1146, 1.442695
    %v1150 = vpow.pop %v1149
    %v1151 = vmul.f32 %v1147, 1.442695
    %v1152 = vpow.pop %v1151
    %v1153 = vmul.f32 %v1148, 1.442695
    %v1154 = vpow.pop %v1153
    %v1155 = vadd.f32 %v1150, 1.0
    %v1156 = vadd.f32 %v1152, 1.0
    %v1157 = vadd.f32 %v1154, 1.0
    %v1158 = vrcp.pop %v1155
    %v1159 = vmul.f32 1.0, %v1158
    %v1160 = vrcp.pop %v1156
    %v1161 = vmul.f32 1.0, %v1160
    %v1162 = vrcp.pop %v1157
    %v1163 = vmul.f32 1.0, %v1162
    %v1164 = vtanh.pop %v1145
    %v1165 = vmul.f32 %v1161, %v1056
    %v1166 = vmul.f32 %v1159, %v1164
    %v1167 = vadd.f32 %v1165, %v1166
    %v1168 = vtanh.pop %v1167
    %v1169 = vmul.f32 %v1163, %v1168
    %v1170 = vpack.c.bf16 %v1169, %v1169
    %v1171 = vld [vmem:[#allocation8] sm:$0xf]
    %v1172 = vld [vmem:[#allocation8 + $0x4] sm:$0xf]
    %v1173 = vld [vmem:[#allocation8 + $0x8] sm:$0xf]
    %v1174 = vld [vmem:[#allocation8 + $0xc] sm:$0xf]
    %v1175 = vld [vmem:[#allocation8 + $0x10] sm:$0xf]
    %v1176 = vld [vmem:[#allocation8 + $0x14] sm:$0xf]
    %v1177 = vld [vmem:[#allocation8 + $0x18] sm:$0xf]
    %v1178 = vld [vmem:[#allocation8 + $0x1c] sm:$0xf]
    %v1179 = vld [vmem:[#allocation8 + $0x20] sm:$0xf]
    %v1180 = vld [vmem:[#allocation8 + $0x24] sm:$0xf]
    %v1181 = vld [vmem:[#allocation8 + $0x28] sm:$0xf]
    %v1182 = vld [vmem:[#allocation8 + $0x2c] sm:$0xf]
    %v1183 = vld [vmem:[#allocation8 + $0x30] sm:$0xf]
    %v1184 = vld [vmem:[#allocation8 + $0x34] sm:$0xf]
    %v1185 = vld [vmem:[#allocation8 + $0x38] sm:$0xf]
    %v1186 = vld [vmem:[#allocation8 + $0x3c] sm:$0xf]
    %v1187 = vld [vmem:[%s5] sm:$0x1]
    %v1189 = vlaneseq
    %v1190 = vshrl.u32 %v1189, 7
    %v1191 = vsub.s32 0, %v1190
    %v1192 = vrot.slane %v1187, %v1191
    %v1210 = vunpack.c.l.b16 %v1171
    %v1211 = vunpack.c.l.b16 %v1172
    %v1212 = vunpack.c.l.b16 %v1173
    %v1213 = vunpack.c.l.b16 %v1174
    %v1214 = vunpack.c.l.b16 %v1175
    %v1215 = vunpack.c.l.b16 %v1176
    %v1216 = vunpack.c.l.b16 %v1177
    %v1217 = vunpack.c.l.b16 %v1178
    %v1218 = vunpack.c.l.b16 %v1179
    %v1219 = vunpack.c.l.b16 %v1180
    %v1220 = vunpack.c.l.b16 %v1181
    %v1221 = vunpack.c.l.b16 %v1182
    %v1222 = vunpack.c.l.b16 %v1183
    %v1223 = vunpack.c.l.b16 %v1184
    %v1224 = vunpack.c.l.b16 %v1185
    %v1225 = vunpack.c.l.b16 %v1186
    %v1226 = vpack.c.b16 %v1211, %v1210
    %v1227 = vpack.c.b16 %v1213, %v1212
    %v1228 = vpack.c.b16 %v1215, %v1214
    %v1229 = vpack.c.b16 %v1217, %v1216
    %v1230 = vpack.c.b16 %v1219, %v1218
    %v1231 = vpack.c.b16 %v1221, %v1220
    %v1232 = vpack.c.b16 %v1223, %v1222
    %v1233 = vpack.c.b16 %v1225, %v1224
    %1242 = vmatprep.subr.bf16.mxu0 0
    %1243 = vmatpush1.bf16.msra.mxu0 %v1226
    %1244 = vmatprep.subr.bf16.mxu0 0
    %1245 = vmatpush1.bf16.msra.mxu0 %v1227
    %1246 = vmatprep.subr.bf16.mxu0 0
    %1247 = vmatpush1.bf16.msra.mxu0 %v1228
    %1248 = vmatprep.subr.bf16.mxu0 0
    %1249 = vmatpush1.bf16.msra.mxu0 %v1229
    %1250 = vmatprep.subr.bf16.mxu0 0
    %1251 = vmatpush1.bf16.msra.mxu0 %v1230
    %1252 = vmatprep.subr.bf16.mxu0 0
    %1253 = vmatpush1.bf16.msra.mxu0 %v1231
    %1254 = vmatprep.subr.bf16.mxu0 0
    %1255 = vmatpush1.bf16.msra.mxu0 %v1232
    %1256 = vmatprep.subr.bf16.mxu0 0
    %1257 = vmatpush1.bf16.msra.mxu0 %v1233
    %1258 = vmatprep.subr.bf16.mxu0 0
    %1259 = vmatpush1.bf16.msra.mxu0 0
    %1260 = vmatprep.subr.bf16.mxu0 0
    %1261 = vmatpush1.bf16.msra.mxu0 0
    %1262 = vmatprep.subr.bf16.mxu0 0
    %1263 = vmatpush1.bf16.msra.mxu0 0
    %1264 = vmatprep.subr.bf16.mxu0 0
    %1265 = vmatpush1.bf16.msra.mxu0 0
    %1266 = vmatprep.subr.bf16.mxu0 0
    %1267 = vmatpush1.bf16.msra.mxu0 0
    %1268 = vmatprep.subr.bf16.mxu0 0
    %1269 = vmatpush1.bf16.msra.mxu0 0
    %1270 = vmatprep.subr.bf16.mxu0 0
    %1271 = vmatpush1.bf16.msra.mxu0 0
    %1272 = vmatprep.subr.bf16.mxu0 0
    %1273 = vmatpush1.bf16.msra.mxu0 0
    %1274 = vmatprep.mubr.bf16.mxu0 0
    %1275 = vmatmul.mubr.bf16.gmra.mrb[0].mxu0 %v1170
    %v1276 = vpop.f32.mrb[0].mxu0
    %v1277 = vadd.f32 %v1192, %v1276
    %v1278 = vpop.f32.mrb[0].mxu0
    %v1279 = vpop.f32.mrb[0].mxu0
    %v1280 = vpop.f32.mrb[0].mxu0
    %1281 = vdwg.mxu0
    %1282 = vst [vmem:[#allocation10] sm:$0xff] %v1277
    // Predicated region
    $region42: #{tpu_custom_call.1} parent=1 // pred_check
      _
    $region43: #{tpu_custom_call.1} parent=1 // pred_check_branch
      %1284 = sbr.rel (0) target = $region45
    $region44: #{tpu_custom_call.1} parent=1 // pred_region
      %s1286 = ssub.s32 128, 128
      %1287 = vsyncadd [#allocation4], %s1286
      %s1289 = sshll.u32 [#allocation10], 4
      %s1290 = int_to_ptr.vmem [resolvable:$true] %s1289
      %1292 = dma.vmem_to_hbm [thread:$0]  %s1290, 128, %s6, [#allocation4]
    $region45: #{tpu_custom_call.1} parent=1 // pred_fallthru
      _
    // Predicated region
    $region46: #{tpu_custom_call.1} parent=1 // pred_check
      _
    $region47: #{tpu_custom_call.1} parent=1 // pred_check_branch
      %1294 = sbr.rel (0) target = $region49
    $region48: #{tpu_custom_call.1} parent=1 // pred_region
      %1295 = dma.done [#allocation4], 128
    $region49: #{tpu_custom_call.1} parent=1 // pred_fallthru
      _
    %1296 = vsyncpa [#allocation3], 1
    %1297 = vsyncpa [#allocation6], 1
    %1298 = vsyncpa [#allocation9], 1
    %1299 = vsyncpa [#allocation4], 1

</llo_original>
